<compile_context>
chip_gen: v5e
topology: v5e:2x2
jax: 0.10.0
libtpu: 0.0.40
codegen_flags: <defaults>
</compile_context>

<pallas_src>
import functools

import jax
import jax.numpy as jnp
from jax.experimental import pallas as pl
from jax.experimental.pallas import tpu as pltpu


def slope_loss_kernel(u_ref, l_ref, o_ref, acc_ref, *,
                      tm, tn, m_rows, n_cols, tiles_per_chunk,
                      row_edge_from, col_ragged):
    c = pl.program_id(0)          # parallel chunk (maps to a TC on 2-TC parts)
    t = pl.program_id(1)          # row-tile reduction step within the chunk
    j = pl.program_id(2)          # column-tile reduction step (usually size 1)

    @pl.when(jnp.logical_and(t == 0, j == 0))
    def _():
        acc_ref[...] = jnp.zeros_like(acc_ref)

    x = u_ref[...].astype(jnp.float32) - l_ref[...].astype(jnp.float32)
    # numerically-stable softplus: max(x, 0) + log1p(exp(-|x|))  (EUP work)
    sp = jnp.maximum(x, 0.0) + jnp.log1p(jnp.exp(-jnp.abs(x)))

    tile_idx = c * tiles_per_chunk + t

    def accumulate(vals):
        # Pure-VPU accumulation: fold tm rows into the (8, tn) accumulator.
        acc_ref[...] += vals.reshape(tm // 8, 8, tn).sum(axis=0)

    # Static composition of "this tile touches a ragged / out-of-range edge".
    preds = []
    if row_edge_from is not None:
        preds.append(tile_idx >= row_edge_from)
    if col_ragged:
        preds.append(j == pl.num_programs(2) - 1)

    if not preds:
        # No raggedness anywhere: every tile takes the mask-free fast path.
        accumulate(sp)
    else:
        need_mask = functools.reduce(jnp.logical_or, preds)

        @pl.when(need_mask)
        def _():
            keep = None
            if row_edge_from is not None:
                rows = tile_idx * tm + jax.lax.broadcasted_iota(
                    jnp.int32, (tm, tn), 0)
                keep = rows < m_rows
            if col_ragged:
                cols = j * tn + jax.lax.broadcasted_iota(
                    jnp.int32, (tm, tn), 1)
                ck = cols < n_cols
                keep = ck if keep is None else jnp.logical_and(keep, ck)
            accumulate(jnp.where(keep, sp, 0.0))

        @pl.when(jnp.logical_not(need_mask))
        def _():
            accumulate(sp)

    @pl.when(jnp.logical_and(t == pl.num_programs(1) - 1,
                             j == pl.num_programs(2) - 1))
    def _():
        total = jnp.sum(acc_ref[...])                   # one XLU reduce / chunk
        o_ref[...] = jnp.broadcast_to(total, (1, 128))  # lane-dense partial


def _single_tensorcore_chip():
    # v5e / v6e have one TensorCore per chip; v4 / v5p / v7x have two.
    try:
        kind = jax.devices()[0].device_kind.lower()
    except Exception:
        return False
    return any(s in kind for s in
               ("v5e", "v5 lite", "v5lite", "v6e", "v6 lite", "v6lite"))


def slope_loss(upper, lower, label, *,
               target_block_bytes=4 * 1024 * 1024,
               num_chunks=None):
    # `label` indexing has no effect on the returned loss in the reference
    # module (dead code), so it is intentionally not fed to the kernel.
    del label
    M, N = upper.shape
    itemsize = jnp.dtype(upper.dtype).itemsize
    # Native sublane tile: 8 for 32-bit, 16 for bf16/f16, 32 for int8/fp8.
    sublane = {4: 8, 2: 16, 1: 32}.get(itemsize, 8)

    # ---- tile sizing -------------------------------------------------------
    if N * sublane * itemsize <= target_block_bytes:
        # Common case: full-width rows, big row tiles.
        tn, col_tiles = N, 1
        tm = (target_block_bytes // (N * itemsize)) // sublane * sublane
        tm = max(sublane, tm)
        tm = min(tm, pl.cdiv(M, sublane) * sublane)
    else:
        # Wide-N guard: lane-dense (multiple-of-128) column tiles bound the
        # block bytes so 2 inputs x 2 buffers always fit scoped VMEM.
        tn = max(128, (target_block_bytes // (sublane * itemsize)) // 128 * 128)
        tn = min(tn, pl.cdiv(N, 128) * 128)
        col_tiles = pl.cdiv(N, tn)
        tm = sublane

    tiles_total = pl.cdiv(M, tm)

    if num_chunks is None:
        num_chunks = 1 if (_single_tensorcore_chip() or tiles_total < 2) else 2
    num_chunks = max(1, min(num_chunks, tiles_total))
    tiles_per_chunk = pl.cdiv(tiles_total, num_chunks)

    # Which row tiles need masking (ragged last tile and/or the clamped
    # duplicate tile a 2-chunk split can create when tiles_total is odd).
    row_ragged = (M % tm) != 0
    has_dup = num_chunks * tiles_per_chunk > tiles_total
    if row_ragged:
        row_edge_from = tiles_total - 1
    elif has_dup:
        row_edge_from = tiles_total
    else:
        row_edge_from = None
    col_ragged = (N % tn) != 0

    def in_map(c, t, j):
        idx = c * tiles_per_chunk + t
        # Clamp requested row tiles past the end of the array (their rows are
        # masked to zero inside the kernel anyway).
        return (jnp.minimum(idx, tiles_total - 1), j)

    kernel = functools.partial(
        slope_loss_kernel, tm=tm, tn=tn, m_rows=M, n_cols=N,
        tiles_per_chunk=tiles_per_chunk,
        row_edge_from=row_edge_from, col_ragged=col_ragged)

    # 2 inputs x 2 pipeline buffers = 4 blocks live; ~6x gives headroom while
    # staying well under v7x's 64 MiB physical VMEM per TensorCore.
    block_bytes = tm * tn * itemsize
    vmem_limit = int(min(max(6 * block_bytes + (1 << 20), 16 << 20), 60 << 20))

    out = pl.pallas_call(
        kernel,
        out_shape=jax.ShapeDtypeStruct((1, num_chunks * 128), jnp.float32),
        grid=(num_chunks, tiles_per_chunk, col_tiles),
        in_specs=[
            pl.BlockSpec((tm, tn), in_map),
            pl.BlockSpec((tm, tn), in_map),
        ],
        out_specs=pl.BlockSpec((1, 128), lambda c, t, j: (0, c)),
        scratch_shapes=[pltpu.VMEM((8, tn), jnp.float32)],
        compiler_params=pltpu.CompilerParams(
            dimension_semantics=("parallel", "arbitrary", "arbitrary"),
            vmem_limit_bytes=vmem_limit),
        cost_estimate=pl.CostEstimate(
            flops=5 * M * N,
            transcendentals=2 * M * N,
            bytes_accessed=2 * M * N * itemsize + num_chunks * 128 * 4),
    )(upper, lower)

    partials = out.reshape(num_chunks, 128)[:, 0]
    return jnp.sum(partials) / jnp.float32(M * N)


if __name__ == "__main__":
    key = jax.random.PRNGKey(0)
    keys = jax.random.split(key, 9)

    def ref_loss(u, l):
        return jnp.mean(jax.nn.softplus(u - l))

    # Case 1: small, single tile, fast (mask-free) path.
    M, N = 16, 128
    upper = jax.random.normal(keys[0], (M, N), dtype=jnp.float32)
    lower = jax.random.normal(keys[1], (M, N), dtype=jnp.float32)
    label = jax.random.randint(keys[2], (M,), 0, M, dtype=jnp.int32)
    loss = jax.block_until_ready(slope_loss(upper, lower, label))
    assert jnp.allclose(loss, ref_loss(upper, lower), atol=1e-5, rtol=1e-5), \
        (loss, ref_loss(upper, lower))

    # Case 2: multi-tile reduction, 2 chunks, ragged last row tile (masked).
    M2, N2 = 200, 128
    upper2 = jax.random.normal(keys[3], (M2, N2), dtype=jnp.float32)
    lower2 = jax.random.normal(keys[4], (M2, N2), dtype=jnp.float32)
    label2 = jnp.zeros((M2,), dtype=jnp.int32)
    loss2 = jax.block_until_ready(
        slope_loss(upper2, lower2, label2,
                   target_block_bytes=64 * 128 * 4, num_chunks=2))
    assert jnp.allclose(loss2, ref_loss(upper2, lower2), atol=1e-5, rtol=1e-5), \
        (loss2, ref_loss(upper2, lower2))

    # Case 3: odd tile count with 2 chunks -> clamped duplicate tile (masked),
    # M an exact multiple of the tile so steady-state tiles stay mask-free.
    M3, N3 = 192, 128
    upper3 = jax.random.normal(keys[5], (M3, N3), dtype=jnp.float32)
    lower3 = jax.random.normal(keys[6], (M3, N3), dtype=jnp.float32)
    label3 = jnp.zeros((M3,), dtype=jnp.int32)
    loss3 = jax.block_until_ready(
        slope_loss(upper3, lower3, label3,
                   target_block_bytes=64 * 128 * 4, num_chunks=2))
    assert jnp.allclose(loss3, ref_loss(upper3, lower3), atol=1e-5, rtol=1e-5), \
        (loss3, ref_loss(upper3, lower3))

    # Case 4: wide-N guard -> column tiling with a ragged (masked) last
    # column tile.
    M4, N4 = 24, 300
    upper4 = jax.random.normal(keys[7], (M4, N4), dtype=jnp.float32)
    lower4 = jax.random.normal(keys[8], (M4, N4), dtype=jnp.float32)
    label4 = jnp.zeros((M4,), dtype=jnp.int32)
    loss4 = jax.block_until_ready(
        slope_loss(upper4, lower4, label4,
                   target_block_bytes=8 * 256 * 4, num_chunks=1))
    assert jnp.allclose(loss4, ref_loss(upper4, lower4), atol=1e-5, rtol=1e-5), \
        (loss4, ref_loss(upper4, lower4))

    print("KERNEL_OK")
</pallas_src>

<mosaic_0001>
module attributes {stable_mosaic.version = 11 : i64} {
  func.func @slope_loss_kernel(%arg0: i32, %arg1: i32, %arg2: i32, %arg3: memref<16x128xf32, #tpu.memory_space<vmem>>, %arg4: memref<16x128xf32, #tpu.memory_space<vmem>>, %arg5: memref<1x128xf32, #tpu.memory_space<vmem>>, %arg6: memref<8x128xf32, #tpu.memory_space<vmem>>) attributes {dimension_semantics = [#tpu.dimension_semantics<parallel>, #tpu.dimension_semantics<arbitrary>, #tpu.dimension_semantics<arbitrary>], iteration_bounds = array<i64: 1, 1, 1>, scalar_prefetch = 0 : i64, scratch_operands = 1 : i64, tpu.core_type = #tpu.core_type<tc>, window_params = [{transform_indices = @transform_0, window_bounds = array<i64: 16, 128>}, {transform_indices = @transform_1, window_bounds = array<i64: 16, 128>}, {transform_indices = @transform_2, window_bounds = array<i64: 1, 128>}]} {
    %c0_i32 = arith.constant 0 : i32
    %0 = arith.cmpi eq, %arg1, %c0_i32 : i32
    %c0_i32_0 = arith.constant 0 : i32
    %1 = arith.cmpi eq, %arg2, %c0_i32_0 : i32
    %2 = arith.andi %0, %1 : i1
    %3 = arith.extui %2 : i1 to i32
    %c0_i32_1 = arith.constant 0 : i32
    %4 = arith.cmpi ne, %3, %c0_i32_1 : i32
    scf.if %4 {
      %cst_14 = arith.constant 0.000000e+00 : f32
      %26 = vector.broadcast %cst_14 : f32 to vector<8x128xf32>
      %c0_15 = arith.constant 0 : index
      %c0_16 = arith.constant 0 : index
      %27 = vector.load %arg6[%c0_15, %c0_16] : memref<8x128xf32, #tpu.memory_space<vmem>>, vector<8x128xf32>
      tpu.vector_store %arg6[%c0_15, %c0_16], %26 {strides = array<i32>} : memref<8x128xf32, #tpu.memory_space<vmem>>, vector<8x128xf32>,
    } else {
    }
    %c0 = arith.constant 0 : index
    %c0_2 = arith.constant 0 : index
    %5 = vector.load %arg3[%c0, %c0_2] : memref<16x128xf32, #tpu.memory_space<vmem>>, vector<16x128xf32>
    %c0_3 = arith.constant 0 : index
    %c0_4 = arith.constant 0 : index
    %6 = vector.load %arg4[%c0_3, %c0_4] : memref<16x128xf32, #tpu.memory_space<vmem>>, vector<16x128xf32>
    %7 = arith.subf %5, %6 : vector<16x128xf32>
    %cst = arith.constant 0.000000e+00 : f32
    %8 = vector.broadcast %cst : f32 to vector<16x128xf32>
    %9 = arith.maximumf %7, %8 : vector<16x128xf32>
    %10 = math.absf %7 : vector<16x128xf32>
    %cst_5 = arith.constant 0.000000e+00 : f32
    %11 = vector.broadcast %cst_5 : f32 to vector<16x128xf32>
    %12 = arith.subf %11, %10 : vector<16x128xf32>
    %13 = math.exp %12 : vector<16x128xf32>
    %14 = math.log1p %13 : vector<16x128xf32>
    %15 = arith.addf %9, %14 : vector<16x128xf32>
    %c0_6 = arith.constant 0 : index
    %c0_7 = arith.constant 0 : index
    %16 = vector.load %arg6[%c0_6, %c0_7] : memref<8x128xf32, #tpu.memory_space<vmem>>, vector<8x128xf32>
    %17 = vector.shape_cast %15 : vector<16x128xf32> to vector<2x8x128xf32>
    %cst_8 = arith.constant dense<0.000000e+00> : vector<8x128xf32>
    %18 = vector.multi_reduction <add>, %17, %cst_8 [0] : vector<2x8x128xf32> to vector<8x128xf32>
    %19 = arith.addf %16, %18 : vector<8x128xf32>
    %c0_9 = arith.constant 0 : index
    %c0_10 = arith.constant 0 : index
    %20 = vector.load %arg6[%c0_9, %c0_10] : memref<8x128xf32, #tpu.memory_space<vmem>>, vector<8x128xf32>
    tpu.vector_store %arg6[%c0_9, %c0_10], %19 {strides = array<i32>} : memref<8x128xf32, #tpu.memory_space<vmem>>, vector<8x128xf32>,
    %c0_i32_11 = arith.constant 0 : i32
    %21 = arith.cmpi eq, %arg1, %c0_i32_11 : i32
    %c0_i32_12 = arith.constant 0 : i32
    %22 = arith.cmpi eq, %arg2, %c0_i32_12 : i32
    %23 = arith.andi %21, %22 : i1
    %24 = arith.extui %23 : i1 to i32
    %c0_i32_13 = arith.constant 0 : i32
    %25 = arith.cmpi ne, %24, %c0_i32_13 : i32
    scf.if %25 {
      %c0_14 = arith.constant 0 : index
      %c0_15 = arith.constant 0 : index
      %26 = vector.load %arg6[%c0_14, %c0_15] : memref<8x128xf32, #tpu.memory_space<vmem>>, vector<8x128xf32>
      %27 = vector.shape_cast %26 : vector<8x128xf32> to vector<1x8x128xf32>
      %cst_16 = arith.constant dense<0.000000e+00> : vector<1xf32>
      %28 = vector.multi_reduction <add>, %27, %cst_16 [1, 2] : vector<1x8x128xf32> to vector<1xf32>
      %29 = vector.shape_cast %28 : vector<1xf32> to vector<1x1x1xf32>
      %30 = vector.extract %29[0, 0, 0] : f32 from vector<1x1x1xf32>
      %31 = vector.broadcast %30 : f32 to vector<1x128xf32>
      %c0_17 = arith.constant 0 : index
      %c0_18 = arith.constant 0 : index
      %32 = vector.load %arg5[%c0_17, %c0_18] : memref<1x128xf32, #tpu.memory_space<vmem>>, vector<1x128xf32>
      tpu.vector_store %arg5[%c0_17, %c0_18], %31 {strides = array<i32>} : memref<1x128xf32, #tpu.memory_space<vmem>>, vector<1x128xf32>,
    } else {
    }
    return
  }
  func.func @transform_0(%arg0: i32, %arg1: i32, %arg2: i32) -> (i32, i32) {
    %c1_i32 = arith.constant 1 : i32
    %0 = arith.muli %arg0, %c1_i32 : i32
    %1 = arith.addi %0, %arg1 : i32
    %c0_i32 = arith.constant 0 : i32
    %2 = arith.minsi %1, %c0_i32 : i32
    %c0_i32_0 = arith.constant 0 : i32
    return %2, %arg2 : i32, i32
  }
  func.func @transform_1(%arg0: i32, %arg1: i32, %arg2: i32) -> (i32, i32) {
    %c1_i32 = arith.constant 1 : i32
    %0 = arith.muli %arg0, %c1_i32 : i32
    %1 = arith.addi %0, %arg1 : i32
    %c0_i32 = arith.constant 0 : i32
    %2 = arith.minsi %1, %c0_i32 : i32
    %c0_i32_0 = arith.constant 0 : i32
    return %2, %arg2 : i32, i32
  }
  func.func @transform_2(%arg0: i32, %arg1: i32, %arg2: i32) -> (i32, i32) {
    %c0_i32 = arith.constant 0 : i32
    %c0_i32_0 = arith.constant 0 : i32
    return %c0_i32, %arg0 : i32, i32
  }
}

</mosaic_0001>

<llo_original>
// kernel: tpu_custom_call.1
$region0: #{tpu_custom_call.1}
  #allocation0 [shape = 'u32[]', space=smem, size = 0x4, offset = 0x4, fixed_abs, tag = 'smem constant byte address 0x4 - core index']
  #allocation1 [shape = 'u32[72,128]{1,0:T(1,128)}', space=vmem, size = 0x9000, scoped, tag = 'internal scratch']
  #allocation2 [shape = 'f32[8,128]{1,0:T(8,128)}', space=vmem, size = 0x1000, scoped, tag = 'scratch operand']
  %s0 = inlined_call_operand.hbm [shape: f32[16,128], index: 0, kind: input, shape index: {}]
  %s1 = inlined_call_operand.hbm [shape: f32[16,128], index: 1, kind: input, shape index: {}]
  %s2 = inlined_call_operand.hbm [shape: f32[1,128], index: 2, kind: output, shape index: {}]
  %s3 = sld [smem:[#allocation0]]
  $region34: #{tpu_custom_call.1} parent=0
    _
  %s5 = ssub.s32 1, %s3
  %s6 = scalar_select 0, %s5, %s3
  $region1: #{tpu_custom_call.1} parent=0
    #allocation3 [shape = 'u8[8192]{0}', space=vmem, size = 0x2000, scoped, tag = 'input window, operand 0, single buffered']
    #allocation4 [shape = 's32[1]{0}', space=sflag, size = 0x4, scoped, tag = 'scoped memory for tpu_custom_call.1']
    #allocation5 [shape = 's32[1]{0}', space=sflag, size = 0x4, scoped, tag = 'scoped memory for tpu_custom_call.1']
    #allocation6 [shape = 'u8[8192]{0}', space=vmem, size = 0x2000, scoped, tag = 'input window, operand 1, single buffered']
    #allocation7 [shape = 's32[1]{0}', space=sflag, size = 0x4, scoped, tag = 'scoped memory for tpu_custom_call.1']
    #allocation8 [shape = 'u8[512]{0}', space=vmem, size = 0x400, scoped, tag = 'output window, operand 0, single buffered']
    %7 = vsyncpa [#allocation4], 0
    %8 = vsyncpa [#allocation7], 0
    %9 = vsyncpa [#allocation5], 0
    // Predicated region
    $region2: #{tpu_custom_call.1} parent=1 // pred_check
      _
    $region3: #{tpu_custom_call.1} parent=1 // pred_check_branch
      %11 = sbr.rel (0) target = $region5
    $region4: #{tpu_custom_call.1} parent=1 // pred_region
      %s12 = sadd.s32 0, 0
      %p13 = scmp.lt.s32.totalorder %s12, 0
      %s14 = scalar_select %p13, %s12, 0
      %s15 = smul.u32 2, %s14
      %17 = vsyncadd [#allocation4], 0
      %s18 = smul.addr %s15, 8
      %s19 = scalar_lea.hbm %s0, %s18
      %s20 = sshll.u32 %s19, 4
      %s21 = int_to_ptr.hbm [resolvable:$true] %s20
      %s22 = sshll.u32 [#allocation3], 4
      %s23 = int_to_ptr.vmem [resolvable:$true] %s22
      %28 = dma.hbm_to_vmem [thread:$0]  %s21, 256, %s23, [#allocation4], 128, 128, 8
    $region5: #{tpu_custom_call.1} parent=1 // pred_fallthru
      _
    // Predicated region
    $region6: #{tpu_custom_call.1} parent=1 // pred_check
      _
    $region7: #{tpu_custom_call.1} parent=1 // pred_check_branch
      %30 = sbr.rel (0) target = $region9
    $region8: #{tpu_custom_call.1} parent=1 // pred_region
      %s31 = sadd.s32 0, 0
      %p32 = scmp.lt.s32.totalorder %s31, 0
      %s33 = scalar_select %p32, %s31, 0
      %s34 = smul.u32 2, %s33
      %36 = vsyncadd [#allocation7], 0
      %s37 = smul.addr %s34, 8
      %s38 = scalar_lea.hbm %s1, %s37
      %s39 = sshll.u32 %s38, 4
      %s40 = int_to_ptr.hbm [resolvable:$true] %s39
      %s41 = sshll.u32 [#allocation6], 4
      %s42 = int_to_ptr.vmem [resolvable:$true] %s41
      %47 = dma.hbm_to_vmem [thread:$0]  %s40, 256, %s42, [#allocation7], 128, 128, 8
    $region9: #{tpu_custom_call.1} parent=1 // pred_fallthru
      _
    // Predicated region
    $region10: #{tpu_custom_call.1} parent=1 // pred_check
      _
    $region11: #{tpu_custom_call.1} parent=1 // pred_check_branch
      %49 = sbr.rel (0) target = $region13
    $region12: #{tpu_custom_call.1} parent=1 // pred_region
      %51 = dma.done [#allocation4], 256
    $region13: #{tpu_custom_call.1} parent=1 // pred_fallthru
      _
    // Predicated region
    $region14: #{tpu_custom_call.1} parent=1 // pred_check
      _
    $region15: #{tpu_custom_call.1} parent=1 // pred_check_branch
      %53 = sbr.rel (0) target = $region17
    $region16: #{tpu_custom_call.1} parent=1 // pred_region
      %55 = dma.done [#allocation7], 256
    $region17: #{tpu_custom_call.1} parent=1 // pred_fallthru
      _
    %s56 = sadd.s32 0, 0
    %p57 = scmp.lt.s32.totalorder %s56, 0
    %s58 = scalar_select %p57, %s56, 0
    %s59 = smul.u32 2, %s58
    %s60 = sadd.s32 0, 0
    %p61 = scmp.lt.s32.totalorder %s60, 0
    %s62 = scalar_select %p61, %s60, 0
    %s63 = smul.u32 2, %s62
    %p64 = scmp.eq.s32.totalorder 0, 0
    %p65 = scmp.eq.s32.totalorder 0, 0
    %p66 = pnand %p64, %p65
    %p67 = pneg %p66
    // Predicated region
    $region18: #{tpu_custom_call.1} parent=1 // pred_check
      _
    $region19: #{tpu_custom_call.1} parent=1 // pred_check_branch
      %69 = sbr.rel (%p66) target = $region21
    $region20: #{tpu_custom_call.1} parent=1 // pred_region
      %70 = vst [vmem:[#allocation2] sm:$0xff] 0.0
    $region21: #{tpu_custom_call.1} parent=1 // pred_fallthru
      _
    %v71 = vld [vmem:[#allocation3] sm:$0xff]
    %v72 = vld [vmem:[#allocation3 + $0x8] sm:$0xff]
    %v73 = vld [vmem:[#allocation6] sm:$0xff]
    %v74 = vld [vmem:[#allocation6 + $0x8] sm:$0xff]
    %v75 = vsub.f32 %v71, %v73
    %v76 = vsub.f32 %v72, %v74
    %v77 = vmax.f32 %v75, 0.0
    %v78 = vmax.f32 %v76, 0.0
    %v79 = vand.u32 2147483647, %v75
    %v80 = vand.u32 2147483647, %v76
    %v81 = vsub.f32 0.0, %v79
    %v82 = vsub.f32 0.0, %v80
    %v83 = vmul.f32 %v81, 1.442695
    %v84 = vpow.pop %v83
    %v85 = vmul.f32 %v82, 1.442695
    %v86 = vpow.pop %v85
    %v87 = vadd.f32 %v84, 1.0
    %v88 = vlog2.pop %v87
    %v89 = vmul.f32 %v88, 0.6931472
    %v90 = vmul.f32 -0.5, %v84
    %v91 = vadd.f32 %v90, 1.0
    %v92 = vmul.f32 %v91, %v84
    %v93 = vand.u32 2147483647, %v84
    %vm94 = vcmp.lt.f32.partialorder %v93, 0.0004427343
    %v95 = vsel %vm94, %v92, %v89
    %v96 = vadd.f32 %v86, 1.0
    %v97 = vlog2.pop %v96
    %v98 = vmul.f32 %v97, 0.6931472
    %v99 = vmul.f32 -0.5, %v86
    %v100 = vadd.f32 %v99, 1.0
    %v101 = vmul.f32 %v100, %v86
    %v102 = vand.u32 2147483647, %v86
    %vm103 = vcmp.lt.f32.partialorder %v102, 0.0004427343
    %v104 = vsel %vm103, %v101, %v98
    %v105 = vadd.f32 %v77, %v95
    %v106 = vadd.f32 %v78, %v104
    %v107 = vld [vmem:[#allocation2] sm:$0xff]
    %v108 = vadd.f32 %v105, %v106
    %v109 = vadd.f32 %v107, %v108
    %110 = vst [vmem:[#allocation2] sm:$0xff] %v109
    // Predicated region
    $region22: #{tpu_custom_call.1} parent=1 // pred_check
      _
    $region23: #{tpu_custom_call.1} parent=1 // pred_check_branch
      %112 = sbr.rel (%p66) target = $region25
    $region24: #{tpu_custom_call.1} parent=1 // pred_region
      %v113 = vld [vmem:[#allocation2] sm:$0xff]
      %114 = vadd.xlane.f32.xlu0 %v113
      %v115 = vpop.xlane.xlu0 %114
      %v116 = vrot.slane %v115, 4
      %v117 = vadd.f32 %v115, %v116
      %v118 = vrot.slane %v117, 2
      %v119 = vadd.f32 %v117, %v118
      %v120 = vrot.slane %v119, 1
      %v121 = vadd.f32 %v119, %v120
      %s122 = vtos %v121
      %v123 = vstv %s122
      %124 = vst [vmem:[#allocation8] sm:$0x1] %v123
    $region25: #{tpu_custom_call.1} parent=1 // pred_fallthru
      _
    // Predicated region
    $region26: #{tpu_custom_call.1} parent=1 // pred_check
      _
    $region27: #{tpu_custom_call.1} parent=1 // pred_check_branch
      %126 = sbr.rel (0) target = $region29
    $region28: #{tpu_custom_call.1} parent=1 // pred_region
      %128 = vsyncadd [#allocation5], 0
      %s130 = sshll.u32 [#allocation8], 4
      %s131 = int_to_ptr.vmem [resolvable:$true] %s130
      %s132 = sshll.u32 %s2, 4
      %s133 = int_to_ptr.hbm [resolvable:$true] %s132
      %135 = dma.vmem_to_hbm [thread:$0]  %s131, 16, %s133, [#allocation5]
    $region29: #{tpu_custom_call.1} parent=1 // pred_fallthru
      _
    // Predicated region
    $region30: #{tpu_custom_call.1} parent=1 // pred_check
      _
    $region31: #{tpu_custom_call.1} parent=1 // pred_check_branch
      %137 = sbr.rel (0) target = $region33
    $region32: #{tpu_custom_call.1} parent=1 // pred_region
      %139 = dma.done [#allocation5], 16
    $region33: #{tpu_custom_call.1} parent=1 // pred_fallthru
      _
    %140 = vsyncpa [#allocation4], 1
    %141 = vsyncpa [#allocation7], 1
    %142 = vsyncpa [#allocation5], 1

</llo_original>
